<compile_context>
chip_gen: v5e
topology: v5e:2x2
jax: 0.10.0
libtpu: 0.0.40
codegen_flags: <defaults>
</compile_context>

<pallas_src>
import jax
import jax.numpy as jnp
from jax.experimental import pallas as pl
from jax.experimental.pallas import tpu as pltpu

LANE = 128
SUBLANE = 8


def _cdiv(a, b):
    return -(-a // b)


def _round_up(v, m):
    return _cdiv(v, m) * m


# ---------------------------------------------------------------------------
# Kernel
# ---------------------------------------------------------------------------
def fracture_kernel(x_ref, w1_ref, b1_ref, w2_ref, b2_ref, w3_ref, b3_ref,
                    o_ref):
    # x tile -> bf16 for the MXU (no-op if x is already stored as bf16).
    x = x_ref[...].astype(jnp.bfloat16)                       # (tb, D)

    # Linear(D, 128) + LeakyReLU(0.1) — bf16 MXU, f32 accumulation.
    h1 = jnp.dot(x, w1_ref[...], preferred_element_type=jnp.float32)
    h1 = h1 + b1_ref[...]                                     # (tb, 128) f32
    h1 = jnp.where(h1 > 0, h1, 0.1 * h1)

    # Dropout(0.3): identity at inference.

    # Linear(128, 64) + Tanh — bf16 MXU, f32 accumulation; tanh on the EUP
    # (free slot on v6e/v7x; see header TODO about v5e).
    h2 = jnp.dot(h1.astype(jnp.bfloat16), w2_ref[...],
                 preferred_element_type=jnp.float32)
    h2 = jnp.tanh(h2 + b2_ref[...])                           # (tb, 64) f32

    # Linear(64, 1): contract the w3 row against h2 so the result is (1, tb)
    # with batch on LANES (lane-dense unmasked store, no (tb, 1) column).
    # bf16 operands + f32 accumulation keep the MXU on its fast path.
    z = jnp.einsum('ok,bk->ob', w3_ref[...], h2.astype(jnp.bfloat16),
                   preferred_element_type=jnp.float32)        # (1, tb)
    z = z + b3_ref[0]

    # Softplus (numerically stable), lane-dense store.
    o_ref[...] = jnp.maximum(z, 0.0) + jnp.log1p(jnp.exp(-jnp.abs(z)))


# ---------------------------------------------------------------------------
# Wrapper
# ---------------------------------------------------------------------------
def _vmem_limit_bytes():
    """Generation-aware scoped-VMEM request (explicit, not the default)."""
    try:
        phys = int(getattr(pltpu.get_tpu_info(), "vmem_capacity_bytes",
                           64 << 20))
    except Exception:          # info unavailable: assume v7x-like 64 MiB
        phys = 64 << 20
    # Leave >= 16 MiB headroom for XLA-managed VMEM; this kernel never needs
    # more than 64 MiB (v5e/v6e: 64 of 128 MiB, v7x: 48 of 64 MiB).
    return int(min(64 << 20, max(phys - (16 << 20), 16 << 20)))


def _pick_batch_tile(B, D, x_itemsize, vmem_limit):
    """Byte-based batch-tile selection (see header comment)."""
    b_pad0 = _round_up(B, LANE)

    # Per-row on-chip bytes: 2-deep x stream + bf16 working copy of x +
    # h1 (f32 + bf16) + h2 (f32 + bf16) + double-buffered (1, tb) out tile
    # (8-sublane padded) + slack for softplus temporaries.
    per_row = (2 * D * x_itemsize + D * (x_itemsize + 2)
               + 128 * 4 + 128 * 2 + 64 * 4 + 64 * 2
               + 2 * SUBLANE * 4 + 64)
    # Resident weights get double-buffered by the pipeline even though their
    # block index never changes, plus headroom for Mosaic internal scratch.
    fixed = 2 * (D * 128 * 2 + 128 * 64 * 2 + (128 + 64 + 64) * 4) + (2 << 20)

    budget = max(vmem_limit - fixed, per_row * LANE)
    tb_max = max(LANE, (budget // per_row) // LANE * LANE)
    # Cap the largest f32 intermediate (h1: 512 B/row) at ~4 MiB == 8192 rows.
    tb_max = min(tb_max, (4 << 20) // (128 * 4), b_pad0)

    # At least 4 grid steps when the batch allows it (2 per v7x TensorCore so
    # each core overlaps its next-tile DMA with compute).
    n_min = max(1, min(4, b_pad0 // LANE))

    # Largest 128-multiple tile with >= n_min steps and <= ~3% zero padding
    # on the dominant x stream; tb = 128 always satisfies both (b_pad0 is a
    # multiple of 128), so the scan cannot fail.
    tb = LANE
    for cand in range(tb_max, 0, -LANE):
        n = _cdiv(b_pad0, cand)
        if n < n_min:
            continue
        if (n * cand - b_pad0) * 32 <= b_pad0:      # <= 3.125% padded rows
            tb = cand
            break
    return tb


def fracture_net(x, w1, b1, w2, b2, w3, b3, *, tb=None):
    B, D = x.shape
    H1 = w1.shape[1]
    H2 = w2.shape[1]

    vmem_limit = _vmem_limit_bytes()
    if tb is None:
        tb = _pick_batch_tile(B, D, jnp.dtype(x.dtype).itemsize, vmem_limit)
    tb = int(max(LANE, _round_up(int(tb), LANE)))

    b_pad = _round_up(B, tb)
    if b_pad != B:
        x = jnp.pad(x, ((0, b_pad - B), (0, 0)))    # zero rows flow safely
    grid = (b_pad // tb,)

    # One-time casts / reshapes (tiny; weights stay resident in VMEM).
    w1b = w1.astype(jnp.bfloat16)
    w2b = w2.astype(jnp.bfloat16)
    b1f = b1.reshape(1, H1).astype(jnp.float32)
    b2f = b2.reshape(1, H2).astype(jnp.float32)
    w3r = w3.reshape(1, H2).astype(jnp.bfloat16)    # row form, bf16 (MXU)
    b3s = b3.reshape(1).astype(jnp.float32)         # scalar -> SMEM

    def resident(shape):
        # Constant index map: stays in VMEM, no per-step re-DMA.
        return pl.BlockSpec(shape, lambda i: (0, 0))

    out = pl.pallas_call(
        fracture_kernel,
        out_shape=jax.ShapeDtypeStruct((1, b_pad), jnp.float32),
        grid_spec=pltpu.PrefetchScalarGridSpec(
            num_scalar_prefetch=0,
            grid=grid,
            in_specs=[
                pl.BlockSpec((tb, D), lambda i: (i, 0)),       # x (2-deep)
                resident((D, H1)),                             # W1 (bf16)
                resident((1, H1)),                             # b1 (f32)
                resident((H1, H2)),                            # W2 (bf16)
                resident((1, H2)),                             # b2 (f32)
                resident((1, H2)),                             # w3 row (bf16)
                pl.BlockSpec(memory_space=pltpu.MemorySpace.SMEM),  # b3
            ],
            out_specs=pl.BlockSpec((1, tb), lambda i: (0, i)),
        ),
        compiler_params=pltpu.CompilerParams(
            dimension_semantics=("parallel",),
            vmem_limit_bytes=vmem_limit),
    )(x, w1b, b1f, w2b, b2f, w3r, b3s)

    return out[0, :B].reshape(B, 1)


# ---------------------------------------------------------------------------
# Pure-JAX f32 reference + deterministic init
# ---------------------------------------------------------------------------
def fracture_net_ref(x, w1, b1, w2, b2, w3, b3):
    h = jnp.dot(x, w1) + b1.reshape(1, -1)
    h = jnp.where(h > 0, h, 0.1 * h)
    h = jnp.tanh(jnp.dot(h, w2) + b2.reshape(1, -1))
    z = jnp.dot(h, w3.reshape(-1, 1)) + b3.reshape(1, 1)
    return jnp.maximum(z, 0.0) + jnp.log1p(jnp.exp(-jnp.abs(z)))


def init_params(key, D):
    """Deterministic parameter init (uniform, PyTorch-Linear-style bounds)."""
    ks = jax.random.split(key, 6)

    def linear(kw, kb, fan_in, fan_out):
        bound = 1.0 / jnp.sqrt(jnp.float32(fan_in))
        w = jax.random.uniform(kw, (fan_in, fan_out), jnp.float32,
                               -bound, bound)
        b = jax.random.uniform(kb, (1, fan_out), jnp.float32, -bound, bound)
        return w, b

    w1, b1 = linear(ks[0], ks[1], D, 128)
    w2, b2 = linear(ks[2], ks[3], 128, 64)
    w3, b3 = linear(ks[4], ks[5], 64, 1)
    return w1, b1, w2, b2, w3, b3


if __name__ == "__main__":
    key = jax.random.PRNGKey(0)
    k_x, k_p = jax.random.split(key)

    B, D = 8, 32
    x_f32 = jax.random.normal(k_x, (B, D), jnp.float32)
    params = init_params(k_p, D)

    # Store activations as bf16 in HBM (halves the dominant x DMA); the
    # kernel also accepts f32 x and casts inside VMEM.
    x = x_f32.astype(jnp.bfloat16)

    out = fracture_net(x, *params)
    out = jax.block_until_ready(out)

    # Sanity: shape, softplus positivity, tolerance vs. the f32 reference
    # (bf16 MXU operands with f32 accumulation -> ~1e-3..1e-2 error here).
    ref = fracture_net_ref(x.astype(jnp.float32), *params)
    assert out.shape == (B, 1)
    assert bool(jnp.all(out > 0))
    assert bool(jnp.allclose(out, ref, rtol=2e-2, atol=2e-2))
    print("KERNEL_OK")
</pallas_src>

<mosaic_0001>
module attributes {stable_mosaic.version = 11 : i64} {
  func.func @fracture_kernel(%arg0: i32, %arg1: memref<128x32xbf16, #tpu.memory_space<vmem>>, %arg2: memref<32x128xbf16, #tpu.memory_space<vmem>>, %arg3: memref<1x128xf32, #tpu.memory_space<vmem>>, %arg4: memref<128x64xbf16, #tpu.memory_space<vmem>>, %arg5: memref<1x64xf32, #tpu.memory_space<vmem>>, %arg6: memref<1x64xbf16, #tpu.memory_space<vmem>>, %arg7: memref<1xf32, #tpu.memory_space<smem>>, %arg8: memref<1x128xf32, #tpu.memory_space<vmem>>) attributes {dimension_semantics = [#tpu.dimension_semantics<parallel>], iteration_bounds = array<i64: 1>, scalar_prefetch = 0 : i64, scratch_operands = 0 : i64, tpu.core_type = #tpu.core_type<tc>, window_params = [{transform_indices = @transform_0, window_bounds = array<i64: 128, 32>}, {pipeline_mode = #tpu.pipeline_mode<synchronous>, transform_indices = @transform_1, window_bounds = array<i64: 32, 128>}, {pipeline_mode = #tpu.pipeline_mode<synchronous>, transform_indices = @transform_2, window_bounds = array<i64: 1, 128>}, {pipeline_mode = #tpu.pipeline_mode<synchronous>, transform_indices = @transform_3, window_bounds = array<i64: 128, 64>}, {pipeline_mode = #tpu.pipeline_mode<synchronous>, transform_indices = @transform_4, window_bounds = array<i64: 1, 64>}, {pipeline_mode = #tpu.pipeline_mode<synchronous>, transform_indices = @transform_5, window_bounds = array<i64: 1, 64>}, {transform_indices = @transform_6, window_bounds = array<i64: 1>}, {transform_indices = @transform_7, window_bounds = array<i64: 1, 128>}]} {
    %c0 = arith.constant 0 : index
    %c0_0 = arith.constant 0 : index
    %0 = vector.load %arg1[%c0, %c0_0] : memref<128x32xbf16, #tpu.memory_space<vmem>>, vector<128x32xbf16>
    %c0_1 = arith.constant 0 : index
    %c0_2 = arith.constant 0 : index
    %1 = vector.load %arg2[%c0_1, %c0_2] : memref<32x128xbf16, #tpu.memory_space<vmem>>, vector<32x128xbf16>
    %cst = arith.constant dense<0.000000e+00> : vector<128x128xf32>
    %2 = tpu.matmul %0, %1, %cst {dimension_numbers = #tpu.dot_dimension_numbers<[1], [0], [0], [1], [0, 0, 1, 1], [], []>} : vector<128x32xbf16>, vector<32x128xbf16>, vector<128x128xf32> -> vector<128x128xf32>
    %c0_3 = arith.constant 0 : index
    %c0_4 = arith.constant 0 : index
    %3 = vector.load %arg3[%c0_3, %c0_4] : memref<1x128xf32, #tpu.memory_space<vmem>>, vector<1x128xf32>
    %4 = vector.broadcast %3 : vector<1x128xf32> to vector<128x128xf32>
    %5 = arith.addf %2, %4 : vector<128x128xf32>
    %cst_5 = arith.constant 0.000000e+00 : f32
    %6 = vector.broadcast %cst_5 : f32 to vector<128x128xf32>
    %7 = arith.cmpf ogt, %5, %6 : vector<128x128xf32>
    %cst_6 = arith.constant 1.000000e-01 : f32
    %8 = vector.broadcast %cst_6 : f32 to vector<128x128xf32>
    %9 = arith.mulf %8, %5 : vector<128x128xf32>
    %10 = arith.select %7, %5, %9 : vector<128x128xi1>, vector<128x128xf32>
    %11 = arith.truncf %10 : vector<128x128xf32> to vector<128x128xbf16>
    %c0_7 = arith.constant 0 : index
    %c0_8 = arith.constant 0 : index
    %12 = vector.load %arg4[%c0_7, %c0_8] : memref<128x64xbf16, #tpu.memory_space<vmem>>, vector<128x64xbf16>
    %cst_9 = arith.constant dense<0.000000e+00> : vector<128x64xf32>
    %13 = tpu.matmul %11, %12, %cst_9 {dimension_numbers = #tpu.dot_dimension_numbers<[1], [0], [0], [1], [0, 0, 1, 1], [], []>} : vector<128x128xbf16>, vector<128x64xbf16>, vector<128x64xf32> -> vector<128x64xf32>
    %c0_10 = arith.constant 0 : index
    %c0_11 = arith.constant 0 : index
    %14 = vector.load %arg5[%c0_10, %c0_11] : memref<1x64xf32, #tpu.memory_space<vmem>>, vector<1x64xf32>
    %15 = vector.broadcast %14 : vector<1x64xf32> to vector<128x64xf32>
    %16 = arith.addf %13, %15 : vector<128x64xf32>
    %17 = math.tanh %16 : vector<128x64xf32>
    %c0_12 = arith.constant 0 : index
    %c0_13 = arith.constant 0 : index
    %18 = vector.load %arg6[%c0_12, %c0_13] : memref<1x64xbf16, #tpu.memory_space<vmem>>, vector<1x64xbf16>
    %19 = arith.truncf %17 : vector<128x64xf32> to vector<128x64xbf16>
    "tpu.trace_start"() <{level = 10 : i32, message = "ok,bk->ob"}> : () -> ()
    %cst_14 = arith.constant dense<0.000000e+00> : vector<1x128xf32>
    %20 = tpu.matmul %18, %19, %cst_14 {dimension_numbers = #tpu.dot_dimension_numbers<[1], [1], [0], [0], [0, 0, 1, 0], [], []>} : vector<1x64xbf16>, vector<128x64xbf16>, vector<1x128xf32> -> vector<1x128xf32>
    "tpu.trace_stop"() : () -> ()
    %c0_15 = arith.constant 0 : index
    %21 = memref.load %arg7[%c0_15] : memref<1xf32, #tpu.memory_space<smem>>
    %22 = vector.broadcast %21 : f32 to vector<1x128xf32>
    %23 = arith.addf %20, %22 : vector<1x128xf32>
    %cst_16 = arith.constant 0.000000e+00 : f32
    %24 = vector.broadcast %cst_16 : f32 to vector<1x128xf32>
    %25 = arith.maximumf %23, %24 : vector<1x128xf32>
    %26 = math.absf %23 : vector<1x128xf32>
    %cst_17 = arith.constant 0.000000e+00 : f32
    %27 = vector.broadcast %cst_17 : f32 to vector<1x128xf32>
    %28 = arith.subf %27, %26 : vector<1x128xf32>
    %29 = math.exp %28 : vector<1x128xf32>
    %30 = math.log1p %29 : vector<1x128xf32>
    %31 = arith.addf %25, %30 : vector<1x128xf32>
    %c0_18 = arith.constant 0 : index
    %c0_19 = arith.constant 0 : index
    %32 = vector.load %arg8[%c0_18, %c0_19] : memref<1x128xf32, #tpu.memory_space<vmem>>, vector<1x128xf32>
    tpu.vector_store %arg8[%c0_18, %c0_19], %31 {strides = array<i32>} : memref<1x128xf32, #tpu.memory_space<vmem>>, vector<1x128xf32>,
    return
  }
  func.func @transform_0(%arg0: i32) -> (i32, i32) {
    %c0_i32 = arith.constant 0 : i32
    %c0_i32_0 = arith.constant 0 : i32
    return %arg0, %c0_i32 : i32, i32
  }
  func.func @transform_1(%arg0: i32) -> (i32, i32) {
    %c0_i32 = arith.constant 0 : i32
    %c0_i32_0 = arith.constant 0 : i32
    %c0_i32_1 = arith.constant 0 : i32
    return %c0_i32, %c0_i32_0 : i32, i32
  }
  func.func @transform_2(%arg0: i32) -> (i32, i32) {
    %c0_i32 = arith.constant 0 : i32
    %c0_i32_0 = arith.constant 0 : i32
    %c0_i32_1 = arith.constant 0 : i32
    return %c0_i32, %c0_i32_0 : i32, i32
  }
  func.func @transform_3(%arg0: i32) -> (i32, i32) {
    %c0_i32 = arith.constant 0 : i32
    %c0_i32_0 = arith.constant 0 : i32
    %c0_i32_1 = arith.constant 0 : i32
    return %c0_i32, %c0_i32_0 : i32, i32
  }
  func.func @transform_4(%arg0: i32) -> (i32, i32) {
    %c0_i32 = arith.constant 0 : i32
    %c0_i32_0 = arith.constant 0 : i32
    %c0_i32_1 = arith.constant 0 : i32
    return %c0_i32, %c0_i32_0 : i32, i32
  }
  func.func @transform_5(%arg0: i32) -> (i32, i32) {
    %c0_i32 = arith.constant 0 : i32
    %c0_i32_0 = arith.constant 0 : i32
    %c0_i32_1 = arith.constant 0 : i32
    return %c0_i32, %c0_i32_0 : i32, i32
  }
  func.func @transform_6(%arg0: i32) -> i32 {
    %c0_i32 = arith.constant 0 : i32
    %c0_i32_0 = arith.constant 0 : i32
    return %c0_i32 : i32
  }
  func.func @transform_7(%arg0: i32) -> (i32, i32) {
    %c0_i32 = arith.constant 0 : i32
    %c0_i32_0 = arith.constant 0 : i32
    return %c0_i32, %arg0 : i32, i32
  }
}

</mosaic_0001>

<llo_original>
// kernel: tpu_custom_call.1
$region0: #{tpu_custom_call.1}
  #allocation0 [shape = 'u32[]', space=smem, size = 0x4, offset = 0x4, fixed_abs, tag = 'smem constant byte address 0x4 - core index']
  #allocation1 [shape = 'u32[72,128]{1,0:T(1,128)}', space=vmem, size = 0x9000, scoped, tag = 'internal scratch']
  #allocation2 [shape = 'f32[1]{0:T(128)S(6)}', space=smem, size = 0x200, scoped, tag = 'scoped memory for tpu_custom_call.1']
  %s0 = inlined_call_operand.vmem [shape: bf16[128,32], index: 0, kind: input, shape index: {}]
  %s1 = inlined_call_operand.vmem [shape: bf16[32,128], index: 1, kind: input, shape index: {}]
  %s2 = inlined_call_operand.vmem [shape: f32[1,128], index: 2, kind: input, shape index: {}]
  %s3 = inlined_call_operand.vmem [shape: bf16[128,64], index: 3, kind: input, shape index: {}]
  %s4 = inlined_call_operand.vmem [shape: f32[1,64], index: 4, kind: input, shape index: {}]
  %s5 = inlined_call_operand.vmem [shape: bf16[1,64], index: 5, kind: input, shape index: {}]
  %s6 = inlined_call_operand.<no memory space> [shape: f32[1], index: 6, kind: input, shape index: {}]
  %s7 = inlined_call_operand.hbm [shape: f32[1,128], index: 7, kind: output, shape index: {}]
  %s8 = sld [smem:[#allocation0]]
  $region38: #{tpu_custom_call.1} parent=0
    _
  %s10 = ssub.s32 1, %s8
  %s11 = scalar_select 0, %s10, %s8
  %12 = sst [smem:[#allocation2]] %s6
  $region1: #{tpu_custom_call.1} parent=0
    #allocation3 [shape = 'u8[512]{0}', space=vmem, size = 0x400, scoped, tag = 'output window, operand 0, single buffered']
    #allocation4 [shape = 's32[1]{0}', space=sflag, size = 0x4, scoped, tag = 'scoped memory for tpu_custom_call.1']
    %13 = vsyncpa [#allocation4], 0
    // Predicated region
    $region2: #{tpu_custom_call.1} parent=1 // pred_check
      _
    $region3: #{tpu_custom_call.1} parent=1 // pred_check_branch
      %15 = sbr.rel (0) target = $region5
    $region4: #{tpu_custom_call.1} parent=1 // pred_region
      _
    $region5: #{tpu_custom_call.1} parent=1 // pred_fallthru
      _
    // Predicated region
    $region6: #{tpu_custom_call.1} parent=1 // pred_check
      _
    $region7: #{tpu_custom_call.1} parent=1 // pred_check_branch
      %17 = sbr.rel (0) target = $region9
    $region8: #{tpu_custom_call.1} parent=1 // pred_region
      _
    $region9: #{tpu_custom_call.1} parent=1 // pred_fallthru
      _
    // Predicated region
    $region10: #{tpu_custom_call.1} parent=1 // pred_check
      _
    $region11: #{tpu_custom_call.1} parent=1 // pred_check_branch
      %19 = sbr.rel (0) target = $region13
    $region12: #{tpu_custom_call.1} parent=1 // pred_region
      _
    $region13: #{tpu_custom_call.1} parent=1 // pred_fallthru
      _
    // Predicated region
    $region14: #{tpu_custom_call.1} parent=1 // pred_check
      _
    $region15: #{tpu_custom_call.1} parent=1 // pred_check_branch
      %21 = sbr.rel (0) target = $region17
    $region16: #{tpu_custom_call.1} parent=1 // pred_region
      _
    $region17: #{tpu_custom_call.1} parent=1 // pred_fallthru
      _
    // Predicated region
    $region18: #{tpu_custom_call.1} parent=1 // pred_check
      _
    $region19: #{tpu_custom_call.1} parent=1 // pred_check_branch
      %23 = sbr.rel (0) target = $region21
    $region20: #{tpu_custom_call.1} parent=1 // pred_region
      _
    $region21: #{tpu_custom_call.1} parent=1 // pred_fallthru
      _
    // Predicated region
    $region22: #{tpu_custom_call.1} parent=1 // pred_check
      _
    $region23: #{tpu_custom_call.1} parent=1 // pred_check_branch
      %25 = sbr.rel (0) target = $region25
    $region24: #{tpu_custom_call.1} parent=1 // pred_region
      _
    $region25: #{tpu_custom_call.1} parent=1 // pred_fallthru
      _
    // Predicated region
    $region26: #{tpu_custom_call.1} parent=1 // pred_check
      _
    $region27: #{tpu_custom_call.1} parent=1 // pred_check_branch
      %27 = sbr.rel (0) target = $region29
    $region28: #{tpu_custom_call.1} parent=1 // pred_region
      _
    $region29: #{tpu_custom_call.1} parent=1 // pred_fallthru
      _
    %v29 = vld [vmem:[%s0] sm:$0xf]
    %v30 = vld [vmem:[%s0 + $0x4] sm:$0xf]
    %v31 = vld [vmem:[%s0 + $0x8] sm:$0xf]
    %v32 = vld [vmem:[%s0 + $0xc] sm:$0xf]
    %v33 = vld [vmem:[%s0 + $0x10] sm:$0xf]
    %v34 = vld [vmem:[%s0 + $0x14] sm:$0xf]
    %v35 = vld [vmem:[%s0 + $0x18] sm:$0xf]
    %v36 = vld [vmem:[%s0 + $0x1c] sm:$0xf]
    %v37 = vld [vmem:[%s0 + $0x20] sm:$0xf]
    %v38 = vld [vmem:[%s0 + $0x24] sm:$0xf]
    %v39 = vld [vmem:[%s0 + $0x28] sm:$0xf]
    %v40 = vld [vmem:[%s0 + $0x2c] sm:$0xf]
    %v41 = vld [vmem:[%s0 + $0x30] sm:$0xf]
    %v42 = vld [vmem:[%s0 + $0x34] sm:$0xf]
    %v43 = vld [vmem:[%s0 + $0x38] sm:$0xf]
    %v44 = vld [vmem:[%s0 + $0x3c] sm:$0xf]
    %v45 = vld [vmem:[%s1] sm:$0xf]
    %v46 = vld [vmem:[%s1 + $0x4] sm:$0xf]
    %v47 = vld [vmem:[%s1 + $0x8] sm:$0xf]
    %v48 = vld [vmem:[%s1 + $0xc] sm:$0xf]
    %v49 = vld [vmem:[%s2] sm:$0x1]
    %v51 = vperm.slane %v49, 0
    %v69 = vunpack.c.l.b16 %v29
    %v70 = vunpack.c.l.b16 %v30
    %v71 = vunpack.c.l.b16 %v31
    %v72 = vunpack.c.l.b16 %v32
    %v73 = vunpack.c.l.b16 %v33
    %v74 = vunpack.c.l.b16 %v34
    %v75 = vunpack.c.l.b16 %v35
    %v76 = vunpack.c.l.b16 %v36
    %v77 = vunpack.c.l.b16 %v37
    %v78 = vunpack.c.l.b16 %v38
    %v79 = vunpack.c.l.b16 %v39
    %v80 = vunpack.c.l.b16 %v40
    %v81 = vunpack.c.l.b16 %v41
    %v82 = vunpack.c.l.b16 %v42
    %v83 = vunpack.c.l.b16 %v43
    %v84 = vunpack.c.l.b16 %v44
    %v85 = vpack.c.b16 %v70, %v69
    %v86 = vpack.c.b16 %v72, %v71
    %v87 = vpack.c.b16 %v74, %v73
    %v88 = vpack.c.b16 %v76, %v75
    %v89 = vpack.c.b16 %v78, %v77
    %v90 = vpack.c.b16 %v80, %v79
    %v91 = vpack.c.b16 %v82, %v81
    %v92 = vpack.c.b16 %v84, %v83
    %v97 = vunpack.c.l.b16 %v45
    %v98 = vunpack.c.l.b16 %v46
    %v99 = vunpack.c.l.b16 %v47
    %v100 = vunpack.c.l.b16 %v48
    %v101 = vpack.c.b16 %v98, %v97
    %v102 = vpack.c.b16 %v100, %v99
    %vm105 = vcmask 261120
    %v107 = vsel %vm105, %v85, 0
    %v110 = vsel %vm105, %v86, 0
    %v113 = vsel %vm105, %v87, 0
    %v116 = vsel %vm105, %v88, 0
    %v119 = vsel %vm105, %v89, 0
    %v122 = vsel %vm105, %v90, 0
    %v125 = vsel %vm105, %v91, 0
    %v128 = vsel %vm105, %v92, 0
    %130 = vmatpush.bf16.msra.mxu0 0
    %131 = vmatpush.bf16.msra.mxu0 0
    %132 = vmatpush.bf16.msra.mxu0 0
    %133 = vmatpush.bf16.msra.mxu0 0
    %134 = vmatpush.bf16.msra.mxu0 0
    %135 = vmatpush.bf16.msra.mxu0 0
    %136 = vmatpush.bf16.msra.mxu0 %v102
    %137 = vmatpush.bf16.msra.mxu0 %v101
    %138 = vmatmul.bf16.gmra.mxu0 %v107
    %v139 = vpop.f32.mrf.mxu0
    %v140 = vadd.f32 %v51, %v139
    %v141 = vpop.f32.mrf.mxu0
    %v142 = vadd.f32 %v51, %v141
    %143 = vmatmul.bf16.gmra.mxu0 %v110
    %v144 = vpop.f32.mrf.mxu0
    %v145 = vadd.f32 %v51, %v144
    %v146 = vpop.f32.mrf.mxu0
    %v147 = vadd.f32 %v51, %v146
    %148 = vmatmul.bf16.gmra.mxu0 %v113
    %v149 = vpop.f32.mrf.mxu0
    %v150 = vadd.f32 %v51, %v149
    %v151 = vpop.f32.mrf.mxu0
    %v152 = vadd.f32 %v51, %v151
    %153 = vmatmul.bf16.gmra.mxu0 %v116
    %v154 = vpop.f32.mrf.mxu0
    %v155 = vadd.f32 %v51, %v154
    %v156 = vpop.f32.mrf.mxu0
    %v157 = vadd.f32 %v51, %v156
    %158 = vmatmul.bf16.gmra.mxu0 %v119
    %v159 = vpop.f32.mrf.mxu0
    %v160 = vadd.f32 %v51, %v159
    %v161 = vpop.f32.mrf.mxu0
    %v162 = vadd.f32 %v51, %v161
    %163 = vmatmul.bf16.gmra.mxu0 %v122
    %v164 = vpop.f32.mrf.mxu0
    %v165 = vadd.f32 %v51, %v164
    %v166 = vpop.f32.mrf.mxu0
    %v167 = vadd.f32 %v51, %v166
    %168 = vmatmul.bf16.gmra.mxu0 %v125
    %v169 = vpop.f32.mrf.mxu0
    %v170 = vadd.f32 %v51, %v169
    %v171 = vpop.f32.mrf.mxu0
    %v172 = vadd.f32 %v51, %v171
    %173 = vmatmul.bf16.gmra.mxu0 %v128
    %v174 = vpop.f32.mrf.mxu0
    %v175 = vadd.f32 %v51, %v174
    %v176 = vpop.f32.mrf.mxu0
    %v177 = vadd.f32 %v51, %v176
    %178 = vdwg.mxu0
    %vm179 = vcmp.gt.f32.partialorder %v140, 0.0
    %vm180 = vcmp.gt.f32.partialorder %v142, 0.0
    %vm181 = vcmp.gt.f32.partialorder %v145, 0.0
    %vm182 = vcmp.gt.f32.partialorder %v147, 0.0
    %vm183 = vcmp.gt.f32.partialorder %v150, 0.0
    %vm184 = vcmp.gt.f32.partialorder %v152, 0.0
    %vm185 = vcmp.gt.f32.partialorder %v155, 0.0
    %vm186 = vcmp.gt.f32.partialorder %v157, 0.0
    %vm187 = vcmp.gt.f32.partialorder %v160, 0.0
    %vm188 = vcmp.gt.f32.partialorder %v162, 0.0
    %vm189 = vcmp.gt.f32.partialorder %v165, 0.0
    %vm190 = vcmp.gt.f32.partialorder %v167, 0.0
    %vm191 = vcmp.gt.f32.partialorder %v170, 0.0
    %vm192 = vcmp.gt.f32.partialorder %v172, 0.0
    %vm193 = vcmp.gt.f32.partialorder %v175, 0.0
    %vm194 = vcmp.gt.f32.partialorder %v177, 0.0
    %v195 = vmul.f32 %v140, 0.1
    %v196 = vmul.f32 %v142, 0.1
    %v197 = vmul.f32 %v145, 0.1
    %v198 = vmul.f32 %v147, 0.1
    %v199 = vmul.f32 %v150, 0.1
    %v200 = vmul.f32 %v152, 0.1
    %v201 = vmul.f32 %v155, 0.1
    %v202 = vmul.f32 %v157, 0.1
    %v203 = vmul.f32 %v160, 0.1
    %v204 = vmul.f32 %v162, 0.1
    %v205 = vmul.f32 %v165, 0.1
    %v206 = vmul.f32 %v167, 0.1
    %v207 = vmul.f32 %v170, 0.1
    %v208 = vmul.f32 %v172, 0.1
    %v209 = vmul.f32 %v175, 0.1
    %v210 = vmul.f32 %v177, 0.1
    %v211 = vsel %vm179, %v140, %v195
    %v212 = vsel %vm180, %v142, %v196
    %v213 = vsel %vm181, %v145, %v197
    %v214 = vsel %vm182, %v147, %v198
    %v215 = vsel %vm183, %v150, %v199
    %v216 = vsel %vm184, %v152, %v200
    %v217 = vsel %vm185, %v155, %v201
    %v218 = vsel %vm186, %v157, %v202
    %v219 = vsel %vm187, %v160, %v203
    %v220 = vsel %vm188, %v162, %v204
    %v221 = vsel %vm189, %v165, %v205
    %v222 = vsel %vm190, %v167, %v206
    %v223 = vsel %vm191, %v170, %v207
    %v224 = vsel %vm192, %v172, %v208
    %v225 = vsel %vm193, %v175, %v209
    %v226 = vsel %vm194, %v177, %v210
    %v227 = vpack.c.bf16 %v212, %v211
    %v228 = vpack.c.bf16 %v214, %v213
    %v229 = vpack.c.bf16 %v216, %v215
    %v230 = vpack.c.bf16 %v218, %v217
    %v231 = vpack.c.bf16 %v220, %v219
    %v232 = vpack.c.bf16 %v222, %v221
    %v233 = vpack.c.bf16 %v224, %v223
    %v234 = vpack.c.bf16 %v226, %v225
    %v235 = vld [vmem:[%s3] sm:$0xf]
    %v236 = vld [vmem:[%s3 + $0x4] sm:$0xf]
    %v237 = vld [vmem:[%s3 + $0x8] sm:$0xf]
    %v238 = vld [vmem:[%s3 + $0xc] sm:$0xf]
    %v239 = vld [vmem:[%s3 + $0x10] sm:$0xf]
    %v240 = vld [vmem:[%s3 + $0x14] sm:$0xf]
    %v241 = vld [vmem:[%s3 + $0x18] sm:$0xf]
    %v242 = vld [vmem:[%s3 + $0x1c] sm:$0xf]
    %v243 = vld [vmem:[%s3 + $0x20] sm:$0xf]
    %v244 = vld [vmem:[%s3 + $0x24] sm:$0xf]
    %v245 = vld [vmem:[%s3 + $0x28] sm:$0xf]
    %v246 = vld [vmem:[%s3 + $0x2c] sm:$0xf]
    %v247 = vld [vmem:[%s3 + $0x30] sm:$0xf]
    %v248 = vld [vmem:[%s3 + $0x34] sm:$0xf]
    %v249 = vld [vmem:[%s3 + $0x38] sm:$0xf]
    %v250 = vld [vmem:[%s3 + $0x3c] sm:$0xf]
    %v251 = vld [vmem:[%s4] sm:$0x1]
    %v253 = vperm.slane %v251, 0
    %v271 = vunpack.c.l.b16 %v235
    %v272 = vunpack.c.l.b16 %v236
    %v273 = vunpack.c.l.b16 %v237
    %v274 = vunpack.c.l.b16 %v238
    %v275 = vunpack.c.l.b16 %v239
    %v276 = vunpack.c.l.b16 %v240
    %v277 = vunpack.c.l.b16 %v241
    %v278 = vunpack.c.l.b16 %v242
    %v279 = vunpack.c.l.b16 %v243
    %v280 = vunpack.c.l.b16 %v244
    %v281 = vunpack.c.l.b16 %v245
    %v282 = vunpack.c.l.b16 %v246
    %v283 = vunpack.c.l.b16 %v247
    %v284 = vunpack.c.l.b16 %v248
    %v285 = vunpack.c.l.b16 %v249
    %v286 = vunpack.c.l.b16 %v250
    %v287 = vpack.c.b16 %v272, %v271
    %v288 = vpack.c.b16 %v274, %v273
    %v289 = vpack.c.b16 %v276, %v275
    %v290 = vpack.c.b16 %v278, %v277
    %v291 = vpack.c.b16 %v280, %v279
    %v292 = vpack.c.b16 %v282, %v281
    %v293 = vpack.c.b16 %v284, %v283
    %v294 = vpack.c.b16 %v286, %v285
    %303 = vmatpush.bf16.msra.mxu0 %v294
    %304 = vmatpush.bf16.msra.mxu0 %v293
    %305 = vmatpush.bf16.msra.mxu0 %v292
    %306 = vmatpush.bf16.msra.mxu0 %v291
    %307 = vmatpush.bf16.msra.mxu0 %v290
    %308 = vmatpush.bf16.msra.mxu0 %v289
    %309 = vmatpush.bf16.msra.mxu0 %v288
    %310 = vmatpush.bf16.msra.mxu0 %v287
    %311 = vmatmul.bf16.gmra.mxu0 %v227
    %v312 = vpop.f32.mrf.mxu0
    %v313 = vadd.f32 %v253, %v312
    %v314 = vpop.f32.mrf.mxu0
    %v315 = vadd.f32 %v253, %v314
    %316 = vmatmul.bf16.gmra.mxu0 %v228
    %v317 = vpop.f32.mrf.mxu0
    %v318 = vadd.f32 %v253, %v317
    %v319 = vpop.f32.mrf.mxu0
    %v320 = vadd.f32 %v253, %v319
    %321 = vmatmul.bf16.gmra.mxu0 %v229
    %v322 = vpop.f32.mrf.mxu0
    %v323 = vadd.f32 %v253, %v322
    %v324 = vpop.f32.mrf.mxu0
    %v325 = vadd.f32 %v253, %v324
    %326 = vmatmul.bf16.gmra.mxu0 %v230
    %v327 = vpop.f32.mrf.mxu0
    %v328 = vadd.f32 %v253, %v327
    %v329 = vpop.f32.mrf.mxu0
    %v330 = vadd.f32 %v253, %v329
    %331 = vmatmul.bf16.gmra.mxu0 %v231
    %v332 = vpop.f32.mrf.mxu0
    %v333 = vadd.f32 %v253, %v332
    %v334 = vpop.f32.mrf.mxu0
    %v335 = vadd.f32 %v253, %v334
    %336 = vmatmul.bf16.gmra.mxu0 %v232
    %v337 = vpop.f32.mrf.mxu0
    %v338 = vadd.f32 %v253, %v337
    %v339 = vpop.f32.mrf.mxu0
    %v340 = vadd.f32 %v253, %v339
    %341 = vmatmul.bf16.gmra.mxu0 %v233
    %v342 = vpop.f32.mrf.mxu0
    %v343 = vadd.f32 %v253, %v342
    %v344 = vpop.f32.mrf.mxu0
    %v345 = vadd.f32 %v253, %v344
    %346 = vmatmul.bf16.gmra.mxu0 %v234
    %v347 = vpop.f32.mrf.mxu0
    %v348 = vadd.f32 %v253, %v347
    %v349 = vpop.f32.mrf.mxu0
    %v350 = vadd.f32 %v253, %v349
    %351 = vdwg.mxu0
    %v352 = vtanh.pop %v313
    %v353 = vtanh.pop %v315
    %v354 = vtanh.pop %v318
    %v355 = vtanh.pop %v320
    %v356 = vtanh.pop %v323
    %v357 = vtanh.pop %v325
    %v358 = vtanh.pop %v328
    %v359 = vtanh.pop %v330
    %v360 = vtanh.pop %v333
    %v361 = vtanh.pop %v335
    %v362 = vtanh.pop %v338
    %v363 = vtanh.pop %v340
    %v364 = vtanh.pop %v343
    %v365 = vtanh.pop %v345
    %v366 = vtanh.pop %v348
    %v367 = vtanh.pop %v350
    %v368 = vld [vmem:[%s5] sm:$0x1]
    %v369 = vpack.c.bf16 %v353, %v352
    %v370 = vpack.c.bf16 %v355, %v354
    %v371 = vpack.c.bf16 %v357, %v356
    %v372 = vpack.c.bf16 %v359, %v358
    %v373 = vpack.c.bf16 %v361, %v360
    %v374 = vpack.c.bf16 %v363, %v362
    %v375 = vpack.c.bf16 %v365, %v364
    %v376 = vpack.c.bf16 %v367, %v366
    %s377 = sld [smem:[#allocation2]]
    %v378 = vstv %s377
    %vm379 = vcmask 523264
    %v381 = vsel %vm379, %v368, 0
    %v384 = vsel %vm379, %v369, 0
    %v387 = vsel %vm379, %v370, 0
    %v390 = vsel %vm379, %v371, 0
    %v393 = vsel %vm379, %v372, 0
    %v396 = vsel %vm379, %v373, 0
    %v399 = vsel %vm379, %v374, 0
    %v402 = vsel %vm379, %v375, 0
    %v405 = vsel %vm379, %v376, 0
    %407 = vmatpush.bf16.xpose.msra.mxu0 %v405
    %408 = vmatpush.bf16.xpose.msra.mxu0 %v402
    %409 = vmatpush.bf16.xpose.msra.mxu0 %v399
    %410 = vmatpush.bf16.xpose.msra.mxu0 %v396
    %411 = vmatpush.bf16.xpose.msra.mxu0 %v393
    %412 = vmatpush.bf16.xpose.msra.mxu0 %v390
    %413 = vmatpush.bf16.xpose.msra.mxu0 %v387
    %414 = vmatpush.bf16.xpose.msra.mxu0 %v384
    %415 = vmatmul.bf16.gmra.mxu0 %v381
    %v416 = vpop.f32.mrf.mxu0
    %v417 = vadd.f32 %v378, %v416
    %v418 = vpop.f32.mrf.mxu0
    %419 = vdwg.mxu0
    %v420 = vmax.f32 %v417, 0.0
    %v421 = vand.u32 2147483647, %v417
    %v422 = vsub.f32 0.0, %v421
    %v423 = vmul.f32 %v422, 1.442695
    %v424 = vpow.pop %v423
    %v425 = vadd.f32 %v424, 1.0
    %v426 = vlog2.pop %v425
    %v427 = vmul.f32 %v426, 0.6931472
    %v428 = vmul.f32 -0.5, %v424
    %v429 = vadd.f32 %v428, 1.0
    %v430 = vmul.f32 %v429, %v424
    %v431 = vand.u32 2147483647, %v424
    %vm432 = vcmp.lt.f32.partialorder %v431, 0.0004427343
    %v433 = vsel %vm432, %v430, %v427
    %v434 = vadd.f32 %v420, %v433
    %435 = vst [vmem:[#allocation3] sm:$0x1] %v434
    // Predicated region
    $region30: #{tpu_custom_call.1} parent=1 // pred_check
      _
    $region31: #{tpu_custom_call.1} parent=1 // pred_check_branch
      %437 = sbr.rel (0) target = $region33
    $region32: #{tpu_custom_call.1} parent=1 // pred_region
      %439 = vsyncadd [#allocation4], 0
      %s441 = sshll.u32 [#allocation3], 4
      %s442 = int_to_ptr.vmem [resolvable:$true] %s441
      %s443 = sshll.u32 %s7, 4
      %s444 = int_to_ptr.hbm [resolvable:$true] %s443
      %446 = dma.vmem_to_hbm [thread:$0]  %s442, 16, %s444, [#allocation4]
    $region33: #{tpu_custom_call.1} parent=1 // pred_fallthru
      _
    // Predicated region
    $region34: #{tpu_custom_call.1} parent=1 // pred_check
      _
    $region35: #{tpu_custom_call.1} parent=1 // pred_check_branch
      %448 = sbr.rel (0) target = $region37
    $region36: #{tpu_custom_call.1} parent=1 // pred_region
      %450 = dma.done [#allocation4], 16
    $region37: #{tpu_custom_call.1} parent=1 // pred_fallthru
      _
    %451 = vsyncpa [#allocation4], 1

</llo_original>
